<compile_context>
chip_gen: v5e
topology: v5e:2x2
jax: 0.10.0
libtpu: 0.0.40
codegen_flags: <defaults>
</compile_context>

<pallas_src>
import jax
import jax.numpy as jnp
from jax.scipy.linalg import block_diag
from jax.experimental import pallas as pl
from jax.experimental.pallas import tpu as pltpu

# --- example sizes (small, consistent with the module's forward) ---
B = 4    # batch
S = 8    # encoder sequence length
E = 16   # encoder_output_dim
H = 32   # hidden_size
D = 8    # embedding_dim
V = 32   # vocabulary_size
U = 20   # attention units
NUM_ENC_LAYERS = 2


def _make_kernel(S, B, E, H, D, V, U, with_init):
    """Build the fused single-step decoder kernel (closes over static dims)."""
    SB = S * B

    def body(ids_ref, emb_ref, enc_ref, c0h0,
             w1_ref, w2_ref, b12_ref, v_ref, bv_ref, red_ref,
             wih_ref, bih_ref, wfc_ref, bfc_ref,
             logits_ref, h1_ref, c1_ref):
        # ---- embedding lookup as a one-hot matmul (gather-free, in-kernel) ----
        onehot = (jax.lax.broadcasted_iota(jnp.int32, (B, V), 1)
                  == ids_ref[...]).astype(jnp.float32)                       # (B, V)
        x_emb = jnp.dot(onehot, emb_ref[...],
                        preferred_element_type=jnp.float32)                  # (B, D)

        c0 = c0h0[:, :H]                                                     # (B, H)
        h0 = c0h0[:, H:]                                                     # (B, H)

        enc = enc_ref[...]                                                   # (SB, E)

        # ---- fused dual InterAttention (head 0 = cellstate, head 1 = hidden) ----
        # query projection for both heads + pre-summed (b1 + b2) biases
        w1q = (jnp.dot(c0h0, w1_ref[...], preferred_element_type=jnp.float32)
               + b12_ref[...])                                               # (B, 2U)
        w2k = jnp.dot(enc, w2_ref[...],
                      preferred_element_type=jnp.float32)                    # (SB, 2U)
        t = jnp.tanh(w2k + jnp.tile(w1q, (S, 1)))                            # (SB, 2U)
        score = (jnp.dot(t, v_ref[...], preferred_element_type=jnp.float32)
                 + bv_ref[...])                                              # (SB, 2)
        # Per-head global max: softmax is invariant to any per-group constant,
        # and scores are tanh-bounded, so this is a safe stabilization that
        # avoids a grouped (strided) max.
        score = score - jnp.max(score, axis=0, keepdims=True)
        e = jnp.exp(score)                                                   # (SB, 2)

        R = red_ref[...]                                                     # (B, SB)
        denom = jnp.dot(R, e, preferred_element_type=jnp.float32)            # (B, 2)
        w = e / jnp.tile(denom, (S, 1))                                      # (SB, 2)

        # attention contexts for both heads with one reduction matmul
        weighted = jnp.concatenate([enc * w[:, 0:1], enc * w[:, 1:2]],
                                   axis=-1)                                  # (SB, 2E)
        att_cat = jnp.dot(R, weighted,
                          preferred_element_type=jnp.float32)                # (B, 2E) = [att1|att2]

        # ---- one-step LSTM: single fused gate matmul, pre-summed bias ----
        lstm_in = jnp.concatenate([x_emb, att_cat, h0], axis=-1)             # (B, D+2E+H)
        gates = (jnp.dot(lstm_in, wih_ref[...],
                         preferred_element_type=jnp.float32)
                 + bih_ref[...])                                             # (B, 4H)
        i_g = jax.nn.sigmoid(gates[:, 0:H])
        f_g = jax.nn.sigmoid(gates[:, H:2 * H])
        g_g = jnp.tanh(gates[:, 2 * H:3 * H])
        o_g = jax.nn.sigmoid(gates[:, 3 * H:4 * H])
        c1 = f_g * c0 + i_g * g_g
        h1 = o_g * jnp.tanh(c1)

        logits_ref[...] = (jnp.dot(h1, wfc_ref[...],
                                   preferred_element_type=jnp.float32)
                           + bfc_ref[...])
        h1_ref[...] = h1
        c1_ref[...] = c1

    if with_init:
        # encoder_hidden branch: mean over encoder layers + fused init Linears
        def kernel(ids_ref, emb_ref, enc_ref, eh_ref, ec_ref,
                   winit_ref, binit_ref,
                   w1_ref, w2_ref, b12_ref, v_ref, bv_ref, red_ref,
                   wih_ref, bih_ref, wfc_ref, bfc_ref,
                   logits_ref, h1_ref, c1_ref):
            mean_h = jnp.mean(eh_ref[...], axis=0)                           # (B, E)
            mean_c = jnp.mean(ec_ref[...], axis=0)                           # (B, E)
            mc_mh = jnp.concatenate([mean_c, mean_h], axis=-1)               # (B, 2E)
            c0h0 = (jnp.dot(mc_mh, winit_ref[...],
                            preferred_element_type=jnp.float32)
                    + binit_ref[...])                                        # (B, 2H) = [c0|h0]
            body(ids_ref, emb_ref, enc_ref, c0h0,
                 w1_ref, w2_ref, b12_ref, v_ref, bv_ref, red_ref,
                 wih_ref, bih_ref, wfc_ref, bfc_ref,
                 logits_ref, h1_ref, c1_ref)
    else:
        # plain hidden=(h, c) branch: state passed in directly as [c0|h0]
        def kernel(ids_ref, emb_ref, enc_ref, c0h0_ref,
                   w1_ref, w2_ref, b12_ref, v_ref, bv_ref, red_ref,
                   wih_ref, bih_ref, wfc_ref, bfc_ref,
                   logits_ref, h1_ref, c1_ref):
            body(ids_ref, emb_ref, enc_ref, c0h0_ref[...],
                 w1_ref, w2_ref, b12_ref, v_ref, bv_ref, red_ref,
                 wih_ref, bih_ref, wfc_ref, bfc_ref,
                 logits_ref, h1_ref, c1_ref)

    return kernel


def init_params(key):
    """PyTorch-equivalent (unfused) parameters."""
    ks = jax.random.split(key, 26)
    r = lambda k, shape: (0.1 * jax.random.normal(k, shape)).astype(jnp.float32)
    return {
        'emb': r(ks[0], (V, D)),
        # InterAttention for cellstate
        'w1c': r(ks[1], (H, U)), 'b1c': r(ks[2], (1, U)),
        'w2c': r(ks[3], (E, U)), 'b2c': r(ks[4], (1, U)),
        'vc':  r(ks[5], (U, 1)), 'bvc': r(ks[6], (1, 1)),
        # InterAttention for hiddenstate
        'w1h': r(ks[7], (H, U)), 'b1h': r(ks[8], (1, U)),
        'w2h': r(ks[9], (E, U)), 'b2h': r(ks[10], (1, U)),
        'vh':  r(ks[11], (U, 1)), 'bvh': r(ks[12], (1, 1)),
        # LSTM1: input = [emb(D), att1(E), att2(E)]; W_ih stored column-split
        'wih_x':  r(ks[13], (D, 4 * H)),
        'wih_a1': r(ks[14], (E, 4 * H)),
        'wih_a2': r(ks[15], (E, 4 * H)),
        'whh':    r(ks[16], (H, 4 * H)),
        'b_ih':   r(ks[17], (1, 4 * H)),
        'b_hh':   r(ks[18], (1, 4 * H)),
        # fc
        'wfc': r(ks[19], (H, V)), 'bfc': r(ks[20], (1, V)),
        # initial_hiddenstate / initial_cellstate linears (distinct keys)
        'w_init_h': r(ks[21], (E, H)), 'b_init_h': r(ks[22], (1, H)),
        'w_init_c': r(ks[23], (E, H)), 'b_init_c': r(ks[24], (1, H)),
    }


def pack_params(p):
    """One-time weight packing: fused attention heads, fused LSTM gates,
    fused init linears, pre-summed biases."""
    packed = {
        'emb':   p['emb'],
        # [mean_c | mean_h] @ blkdiag(w_init_c, w_init_h) + [b_init_c | b_init_h] = [c0 | h0]
        'winit': block_diag(p['w_init_c'], p['w_init_h']),                    # (2E, 2H)
        'binit': jnp.concatenate([p['b_init_c'], p['b_init_h']], axis=-1),    # (1, 2H)
        # dual-head attention: head 0 = cellstate, head 1 = hiddenstate
        'w1':  block_diag(p['w1c'], p['w1h']),                                # (2H, 2U)
        'w2':  jnp.concatenate([p['w2c'], p['w2h']], axis=-1),                # (E, 2U)
        'b12': jnp.concatenate([p['b1c'] + p['b2c'],
                                p['b1h'] + p['b2h']], axis=-1),               # (1, 2U)
        'v':   block_diag(p['vc'], p['vh']),                                  # (2U, 2)
        'bv':  jnp.concatenate([p['bvc'], p['bvh']], axis=-1),                # (1, 2)
        # fused LSTM gates: rows = [x_emb | att1 | att2 | h0]
        'wih': jnp.concatenate([p['wih_x'], p['wih_a1'],
                                p['wih_a2'], p['whh']], axis=0),              # (D+2E+H, 4H)
        'bih': p['b_ih'] + p['b_hh'],                                         # (1, 4H)
        'wfc': p['wfc'], 'bfc': p['bfc'],
    }
    return jax.tree_util.tree_map(lambda x: x.astype(jnp.float32), packed)


def decoder_forward(packed, x_tokens, encoder_output, hidden=None, encoder_hidden=None):
    """Single decode step.  Returns (logits (B,V), (h (1,B,H), c (1,B,H)))."""
    # shapes derived from the actual inputs (no hidden reliance on globals)
    s, b, e = encoder_output.shape
    v, d = packed['emb'].shape
    h = packed['wfc'].shape[0]
    u = packed['w2'].shape[1] // 2

    ids = x_tokens.reshape(b, 1).astype(jnp.int32)
    enc_flat = encoder_output.reshape(s * b, e)
    # per-batch sequence-reduction matrix: R[bi, si*b + bi] = 1
    red = jnp.tile(jnp.eye(b, dtype=jnp.float32), (1, s))                     # (b, s*b)

    vmem = pl.BlockSpec(memory_space=pltpu.MemorySpace.VMEM)
    common = (packed['w1'], packed['w2'], packed['b12'], packed['v'], packed['bv'],
              red, packed['wih'], packed['bih'], packed['wfc'], packed['bfc'])

    if encoder_hidden is not None:
        eh, ec = encoder_hidden
        kernel = _make_kernel(s, b, e, h, d, v, u, with_init=True)
        inputs = (ids, packed['emb'], enc_flat, eh, ec,
                  packed['winit'], packed['binit']) + common
    else:
        h0, c0 = hidden
        c0h0 = jnp.concatenate([c0[0], h0[0]], axis=-1)                       # (b, 2h)
        kernel = _make_kernel(s, b, e, h, d, v, u, with_init=False)
        inputs = (ids, packed['emb'], enc_flat, c0h0) + common

    # TODO(synk): for autoregressive decoding, move the time loop inside one
    # pallas_call (grid over steps, weights/state resident, key projection
    # hoisted) instead of calling this once per token.
    logits, h1, c1 = pl.pallas_call(
        kernel,
        out_shape=(jax.ShapeDtypeStruct((b, v), jnp.float32),
                   jax.ShapeDtypeStruct((b, h), jnp.float32),
                   jax.ShapeDtypeStruct((b, h), jnp.float32)),
        in_specs=[vmem] * len(inputs),
        out_specs=(vmem, vmem, vmem),
    )(*inputs)
    return logits, (h1[None], c1[None])


def decoder_reference(params, x_tokens, encoder_output, hidden, encoder_hidden=None):
    """Pure-JAX mirror of the PyTorch forward for correctness checking."""
    x_emb = params['emb'][x_tokens][None]                            # (1, B, D)
    if encoder_hidden is not None:
        eh, ec = encoder_hidden
        h0 = jnp.mean(eh, axis=0, keepdims=True) @ params['w_init_h'] + params['b_init_h']
        c0 = jnp.mean(ec, axis=0, keepdims=True) @ params['w_init_c'] + params['b_init_c']
    else:
        h0, c0 = hidden

    def inter_attention(q, kv, w1, b1, w2, b2, v, bv):
        inter = jnp.tanh(q @ w1 + b1 + kv @ w2 + b2)                 # (S, B, U)
        score = inter @ v + bv                                       # (S, B, 1)
        w = jax.nn.softmax(score, axis=0)
        return jnp.sum(kv * w, axis=0)                               # (B, E)

    att1 = inter_attention(c0, encoder_output, params['w1c'], params['b1c'],
                           params['w2c'], params['b2c'], params['vc'], params['bvc'])
    att2 = inter_attention(h0, encoder_output, params['w1h'], params['b1h'],
                           params['w2h'], params['b2h'], params['vh'], params['bvh'])
    x_cat = jnp.concatenate([x_emb[0], att1, att2], axis=-1)         # (B, D+2E)
    wih = jnp.concatenate([params['wih_x'], params['wih_a1'], params['wih_a2']], axis=0)
    gates = x_cat @ wih + h0[0] @ params['whh'] + params['b_ih'] + params['b_hh']
    i_g = jax.nn.sigmoid(gates[:, 0:H])
    f_g = jax.nn.sigmoid(gates[:, H:2 * H])
    g_g = jnp.tanh(gates[:, 2 * H:3 * H])
    o_g = jax.nn.sigmoid(gates[:, 3 * H:4 * H])
    c1 = f_g * c0[0] + i_g * g_g
    h1 = o_g * jnp.tanh(c1)
    logits = h1 @ params['wfc'] + params['bfc']
    return logits, (h1[None], c1[None])


if __name__ == "__main__":
    key = jax.random.PRNGKey(0)
    kp, kx, ke, kh, kc = jax.random.split(key, 5)

    params = init_params(kp)
    packed = pack_params(params)                                     # one-time packing

    x_tokens = jax.random.randint(kx, (B,), 0, V)                    # token ids (B,)
    encoder_output = jax.random.normal(ke, (S, B, E), dtype=jnp.float32)
    encoder_hidden = (jax.random.normal(kh, (NUM_ENC_LAYERS, B, E), dtype=jnp.float32),
                      jax.random.normal(kc, (NUM_ENC_LAYERS, B, E), dtype=jnp.float32))
    dummy_hidden = (jnp.zeros((1, B, H), jnp.float32), jnp.zeros((1, B, H), jnp.float32))

    fwd = jax.jit(decoder_forward)

    # --- path 1: encoder_hidden provided (init-state linears inside kernel) ---
    logits, (h1, c1) = fwd(packed, x_tokens, encoder_output,
                           dummy_hidden, encoder_hidden)
    jax.block_until_ready(logits)
    ref_logits, (ref_h1, ref_c1) = decoder_reference(params, x_tokens, encoder_output,
                                                     dummy_hidden, encoder_hidden)
    assert jnp.allclose(logits, ref_logits, atol=1e-4, rtol=1e-4)
    assert jnp.allclose(h1, ref_h1, atol=1e-4, rtol=1e-4)
    assert jnp.allclose(c1, ref_c1, atol=1e-4, rtol=1e-4)

    # --- path 2: plain hidden=(h, c), encoder_hidden=None ---
    given_hidden = (0.05 * jnp.ones((1, B, H), jnp.float32),
                    -0.05 * jnp.ones((1, B, H), jnp.float32))
    logits2, (h2, c2) = fwd(packed, x_tokens, encoder_output, given_hidden, None)
    jax.block_until_ready(logits2)
    ref_logits2, (ref_h2, ref_c2) = decoder_reference(params, x_tokens, encoder_output,
                                                      given_hidden, None)
    assert jnp.allclose(logits2, ref_logits2, atol=1e-4, rtol=1e-4)
    assert jnp.allclose(h2, ref_h2, atol=1e-4, rtol=1e-4)
    assert jnp.allclose(c2, ref_c2, atol=1e-4, rtol=1e-4)

    print("KERNEL_OK")
</pallas_src>

<mosaic_0001>
module attributes {stable_mosaic.version = 11 : i64} {
  func.func @kernel(%arg0: memref<4x1xi32, #tpu.memory_space<vmem>>, %arg1: memref<32x8xf32, #tpu.memory_space<vmem>>, %arg2: memref<32x16xf32, #tpu.memory_space<vmem>>, %arg3: memref<2x4x16xf32, #tpu.memory_space<vmem>>, %arg4: memref<2x4x16xf32, #tpu.memory_space<vmem>>, %arg5: memref<32x64xf32, #tpu.memory_space<vmem>>, %arg6: memref<1x64xf32, #tpu.memory_space<vmem>>, %arg7: memref<64x40xf32, #tpu.memory_space<vmem>>, %arg8: memref<16x40xf32, #tpu.memory_space<vmem>>, %arg9: memref<1x40xf32, #tpu.memory_space<vmem>>, %arg10: memref<40x2xf32, #tpu.memory_space<vmem>>, %arg11: memref<1x2xf32, #tpu.memory_space<vmem>>, %arg12: memref<4x32xf32, #tpu.memory_space<vmem>>, %arg13: memref<72x128xf32, #tpu.memory_space<vmem>>, %arg14: memref<1x128xf32, #tpu.memory_space<vmem>>, %arg15: memref<32x32xf32, #tpu.memory_space<vmem>>, %arg16: memref<1x32xf32, #tpu.memory_space<vmem>>, %arg17: memref<4x32xf32, #tpu.memory_space<vmem>>, %arg18: memref<4x32xf32, #tpu.memory_space<vmem>>, %arg19: memref<4x32xf32, #tpu.memory_space<vmem>>) attributes {dimension_semantics = [], scalar_prefetch = 0 : i64, scratch_operands = 0 : i64, tpu.core_type = #tpu.core_type<tc>} {
    %c0 = arith.constant 0 : index
    %c0_0 = arith.constant 0 : index
    %c0_1 = arith.constant 0 : index
    %0 = vector.load %arg3[%c0, %c0_0, %c0_1] : memref<2x4x16xf32, #tpu.memory_space<vmem>>, vector<2x4x16xf32>
    %cst = arith.constant dense<0.000000e+00> : vector<4x16xf32>
    %1 = vector.multi_reduction <add>, %0, %cst [0] : vector<2x4x16xf32> to vector<4x16xf32>
    %cst_2 = arith.constant 2.000000e+00 : f32
    %2 = vector.broadcast %cst_2 : f32 to vector<4x16xf32>
    %3 = arith.divf %1, %2 : vector<4x16xf32>
    %c0_3 = arith.constant 0 : index
    %c0_4 = arith.constant 0 : index
    %c0_5 = arith.constant 0 : index
    %4 = vector.load %arg4[%c0_3, %c0_4, %c0_5] : memref<2x4x16xf32, #tpu.memory_space<vmem>>, vector<2x4x16xf32>
    %cst_6 = arith.constant dense<0.000000e+00> : vector<4x16xf32>
    %5 = vector.multi_reduction <add>, %4, %cst_6 [0] : vector<2x4x16xf32> to vector<4x16xf32>
    %cst_7 = arith.constant 2.000000e+00 : f32
    %6 = vector.broadcast %cst_7 : f32 to vector<4x16xf32>
    %7 = arith.divf %5, %6 : vector<4x16xf32>
    %8 = tpu.concatenate %7, %3 in 1 : vector<4x16xf32>, vector<4x16xf32> -> vector<4x32xf32>
    %c0_8 = arith.constant 0 : index
    %c0_9 = arith.constant 0 : index
    %9 = vector.load %arg5[%c0_8, %c0_9] : memref<32x64xf32, #tpu.memory_space<vmem>>, vector<32x64xf32>
    %cst_10 = arith.constant dense<0.000000e+00> : vector<4x64xf32>
    %10 = tpu.matmul %8, %9, %cst_10 {dimension_numbers = #tpu.dot_dimension_numbers<[1], [0], [0], [1], [0, 0, 1, 1], [], []>} : vector<4x32xf32>, vector<32x64xf32>, vector<4x64xf32> -> vector<4x64xf32>
    %c0_11 = arith.constant 0 : index
    %c0_12 = arith.constant 0 : index
    %11 = vector.load %arg6[%c0_11, %c0_12] : memref<1x64xf32, #tpu.memory_space<vmem>>, vector<1x64xf32>
    %12 = vector.broadcast %11 : vector<1x64xf32> to vector<4x64xf32>
    %13 = arith.addf %10, %12 : vector<4x64xf32>
    %14 = tpu.iota {dimensions = array<i32: 1>} : vector<4x32xi32>
    %c0_13 = arith.constant 0 : index
    %c0_14 = arith.constant 0 : index
    %15 = vector.load %arg0[%c0_13, %c0_14] : memref<4x1xi32, #tpu.memory_space<vmem>>, vector<4x1xi32>
    %16 = vector.broadcast %15 : vector<4x1xi32> to vector<4x32xi32>
    %17 = arith.cmpi eq, %14, %16 : vector<4x32xi32>
    %18 = arith.extui %17 : vector<4x32xi1> to vector<4x32xi32>
    %19 = arith.sitofp %18 : vector<4x32xi32> to vector<4x32xf32>
    %c0_15 = arith.constant 0 : index
    %c0_16 = arith.constant 0 : index
    %20 = vector.load %arg1[%c0_15, %c0_16] : memref<32x8xf32, #tpu.memory_space<vmem>>, vector<32x8xf32>
    %cst_17 = arith.constant dense<0.000000e+00> : vector<4x8xf32>
    %21 = tpu.matmul %19, %20, %cst_17 {dimension_numbers = #tpu.dot_dimension_numbers<[1], [0], [0], [1], [0, 0, 1, 1], [], []>} : vector<4x32xf32>, vector<32x8xf32>, vector<4x8xf32> -> vector<4x8xf32>
    %22 = vector.extract_strided_slice %13 {offsets = [0, 0], sizes = [4, 32], strides = [1, 1]} : vector<4x64xf32> to vector<4x32xf32>
    %23 = vector.extract_strided_slice %13 {offsets = [0, 32], sizes = [4, 32], strides = [1, 1]} : vector<4x64xf32> to vector<4x32xf32>
    %c0_18 = arith.constant 0 : index
    %c0_19 = arith.constant 0 : index
    %24 = vector.load %arg2[%c0_18, %c0_19] : memref<32x16xf32, #tpu.memory_space<vmem>>, vector<32x16xf32>
    %c0_20 = arith.constant 0 : index
    %c0_21 = arith.constant 0 : index
    %25 = vector.load %arg7[%c0_20, %c0_21] : memref<64x40xf32, #tpu.memory_space<vmem>>, vector<64x40xf32>
    %cst_22 = arith.constant dense<0.000000e+00> : vector<4x40xf32>
    %26 = tpu.matmul %13, %25, %cst_22 {dimension_numbers = #tpu.dot_dimension_numbers<[1], [0], [0], [1], [0, 0, 1, 1], [], []>} : vector<4x64xf32>, vector<64x40xf32>, vector<4x40xf32> -> vector<4x40xf32>
    %c0_23 = arith.constant 0 : index
    %c0_24 = arith.constant 0 : index
    %27 = vector.load %arg9[%c0_23, %c0_24] : memref<1x40xf32, #tpu.memory_space<vmem>>, vector<1x40xf32>
    %28 = vector.broadcast %27 : vector<1x40xf32> to vector<4x40xf32>
    %29 = arith.addf %26, %28 : vector<4x40xf32>
    %c0_25 = arith.constant 0 : index
    %c0_26 = arith.constant 0 : index
    %30 = vector.load %arg8[%c0_25, %c0_26] : memref<16x40xf32, #tpu.memory_space<vmem>>, vector<16x40xf32>
    %cst_27 = arith.constant dense<0.000000e+00> : vector<32x40xf32>
    %31 = tpu.matmul %24, %30, %cst_27 {dimension_numbers = #tpu.dot_dimension_numbers<[1], [0], [0], [1], [0, 0, 1, 1], [], []>} : vector<32x16xf32>, vector<16x40xf32>, vector<32x40xf32> -> vector<32x40xf32>
    %32 = tpu.concatenate %29, %29, %29, %29, %29, %29, %29, %29 in 0 : vector<4x40xf32>, vector<4x40xf32>, vector<4x40xf32>, vector<4x40xf32>, vector<4x40xf32>, vector<4x40xf32>, vector<4x40xf32>, vector<4x40xf32> -> vector<32x40xf32>
    %33 = arith.addf %31, %32 : vector<32x40xf32>
    %34 = math.tanh %33 : vector<32x40xf32>
    %c0_28 = arith.constant 0 : index
    %c0_29 = arith.constant 0 : index
    %35 = vector.load %arg10[%c0_28, %c0_29] : memref<40x2xf32, #tpu.memory_space<vmem>>, vector<40x2xf32>
    %cst_30 = arith.constant dense<0.000000e+00> : vector<32x2xf32>
    %36 = tpu.matmul %34, %35, %cst_30 {dimension_numbers = #tpu.dot_dimension_numbers<[1], [0], [0], [1], [0, 0, 1, 1], [], []>} : vector<32x40xf32>, vector<40x2xf32>, vector<32x2xf32> -> vector<32x2xf32>
    %c0_31 = arith.constant 0 : index
    %c0_32 = arith.constant 0 : index
    %37 = vector.load %arg11[%c0_31, %c0_32] : memref<1x2xf32, #tpu.memory_space<vmem>>, vector<1x2xf32>
    %38 = vector.broadcast %37 : vector<1x2xf32> to vector<32x2xf32>
    %39 = arith.addf %36, %38 : vector<32x2xf32>
    %cst_33 = arith.constant dense<0xFF800000> : vector<2xf32>
    %40 = vector.multi_reduction <maximumf>, %39, %cst_33 [0] : vector<32x2xf32> to vector<2xf32>
    %41 = vector.shape_cast %40 : vector<2xf32> to vector<1x2xf32>
    %42 = vector.broadcast %41 : vector<1x2xf32> to vector<32x2xf32>
    %43 = arith.subf %39, %42 : vector<32x2xf32>
    %44 = math.exp %43 : vector<32x2xf32>
    %c0_34 = arith.constant 0 : index
    %c0_35 = arith.constant 0 : index
    %45 = vector.load %arg12[%c0_34, %c0_35] : memref<4x32xf32, #tpu.memory_space<vmem>>, vector<4x32xf32>
    %cst_36 = arith.constant dense<0.000000e+00> : vector<4x2xf32>
    %46 = tpu.matmul %45, %44, %cst_36 {dimension_numbers = #tpu.dot_dimension_numbers<[1], [0], [0], [1], [0, 0, 1, 1], [], []>} : vector<4x32xf32>, vector<32x2xf32>, vector<4x2xf32> -> vector<4x2xf32>
    %47 = tpu.concatenate %46, %46, %46, %46, %46, %46, %46, %46 in 0 : vector<4x2xf32>, vector<4x2xf32>, vector<4x2xf32>, vector<4x2xf32>, vector<4x2xf32>, vector<4x2xf32>, vector<4x2xf32>, vector<4x2xf32> -> vector<32x2xf32>
    %48 = arith.divf %44, %47 : vector<32x2xf32>
    %49 = vector.extract_strided_slice %48 {offsets = [0, 0], sizes = [32, 1], strides = [1, 1]} : vector<32x2xf32> to vector<32x1xf32>
    %50 = vector.broadcast %49 : vector<32x1xf32> to vector<32x16xf32>
    %51 = arith.mulf %24, %50 : vector<32x16xf32>
    %52 = vector.extract_strided_slice %48 {offsets = [0, 1], sizes = [32, 1], strides = [1, 1]} : vector<32x2xf32> to vector<32x1xf32>
    %53 = vector.broadcast %52 : vector<32x1xf32> to vector<32x16xf32>
    %54 = arith.mulf %24, %53 : vector<32x16xf32>
    %55 = tpu.concatenate %51, %54 in 1 : vector<32x16xf32>, vector<32x16xf32> -> vector<32x32xf32>
    %cst_37 = arith.constant dense<0.000000e+00> : vector<4x32xf32>
    %56 = tpu.matmul %45, %55, %cst_37 {dimension_numbers = #tpu.dot_dimension_numbers<[1], [0], [0], [1], [0, 0, 1, 1], [], []>} : vector<4x32xf32>, vector<32x32xf32>, vector<4x32xf32> -> vector<4x32xf32>
    %57 = tpu.concatenate %21, %56, %23 in 1 : vector<4x8xf32>, vector<4x32xf32>, vector<4x32xf32> -> vector<4x72xf32>
    %c0_38 = arith.constant 0 : index
    %c0_39 = arith.constant 0 : index
    %58 = vector.load %arg13[%c0_38, %c0_39] : memref<72x128xf32, #tpu.memory_space<vmem>>, vector<72x128xf32>
    %cst_40 = arith.constant dense<0.000000e+00> : vector<4x128xf32>
    %59 = tpu.matmul %57, %58, %cst_40 {dimension_numbers = #tpu.dot_dimension_numbers<[1], [0], [0], [1], [0, 0, 1, 1], [], []>} : vector<4x72xf32>, vector<72x128xf32>, vector<4x128xf32> -> vector<4x128xf32>
    %c0_41 = arith.constant 0 : index
    %c0_42 = arith.constant 0 : index
    %60 = vector.load %arg14[%c0_41, %c0_42] : memref<1x128xf32, #tpu.memory_space<vmem>>, vector<1x128xf32>
    %61 = vector.broadcast %60 : vector<1x128xf32> to vector<4x128xf32>
    %62 = arith.addf %59, %61 : vector<4x128xf32>
    %63 = vector.extract_strided_slice %62 {offsets = [0, 0], sizes = [4, 32], strides = [1, 1]} : vector<4x128xf32> to vector<4x32xf32>
    %64 = arith.negf %63 : vector<4x32xf32>
    %65 = math.exp %64 : vector<4x32xf32>
    %cst_43 = arith.constant 1.000000e+00 : f32
    %66 = vector.broadcast %cst_43 : f32 to vector<4x32xf32>
    %67 = arith.addf %66, %65 : vector<4x32xf32>
    %68 = arith.divf %66, %67 : vector<4x32xf32>
    %69 = vector.extract_strided_slice %62 {offsets = [0, 32], sizes = [4, 32], strides = [1, 1]} : vector<4x128xf32> to vector<4x32xf32>
    %70 = arith.negf %69 : vector<4x32xf32>
    %71 = math.exp %70 : vector<4x32xf32>
    %cst_44 = arith.constant 1.000000e+00 : f32
    %72 = vector.broadcast %cst_44 : f32 to vector<4x32xf32>
    %73 = arith.addf %72, %71 : vector<4x32xf32>
    %74 = arith.divf %72, %73 : vector<4x32xf32>
    %75 = vector.extract_strided_slice %62 {offsets = [0, 64], sizes = [4, 32], strides = [1, 1]} : vector<4x128xf32> to vector<4x32xf32>
    %76 = math.tanh %75 : vector<4x32xf32>
    %77 = vector.extract_strided_slice %62 {offsets = [0, 96], sizes = [4, 32], strides = [1, 1]} : vector<4x128xf32> to vector<4x32xf32>
    %78 = arith.negf %77 : vector<4x32xf32>
    %79 = math.exp %78 : vector<4x32xf32>
    %cst_45 = arith.constant 1.000000e+00 : f32
    %80 = vector.broadcast %cst_45 : f32 to vector<4x32xf32>
    %81 = arith.addf %80, %79 : vector<4x32xf32>
    %82 = arith.divf %80, %81 : vector<4x32xf32>
    %83 = arith.mulf %74, %22 : vector<4x32xf32>
    %84 = arith.mulf %68, %76 : vector<4x32xf32>
    %85 = arith.addf %83, %84 : vector<4x32xf32>
    %86 = math.tanh %85 : vector<4x32xf32>
    %87 = arith.mulf %82, %86 : vector<4x32xf32>
    %c0_46 = arith.constant 0 : index
    %c0_47 = arith.constant 0 : index
    %88 = vector.load %arg15[%c0_46, %c0_47] : memref<32x32xf32, #tpu.memory_space<vmem>>, vector<32x32xf32>
    %cst_48 = arith.constant dense<0.000000e+00> : vector<4x32xf32>
    %89 = tpu.matmul %87, %88, %cst_48 {dimension_numbers = #tpu.dot_dimension_numbers<[1], [0], [0], [1], [0, 0, 1, 1], [], []>} : vector<4x32xf32>, vector<32x32xf32>, vector<4x32xf32> -> vector<4x32xf32>
    %c0_49 = arith.constant 0 : index
    %c0_50 = arith.constant 0 : index
    %90 = vector.load %arg16[%c0_49, %c0_50] : memref<1x32xf32, #tpu.memory_space<vmem>>, vector<1x32xf32>
    %91 = vector.broadcast %90 : vector<1x32xf32> to vector<4x32xf32>
    %92 = arith.addf %89, %91 : vector<4x32xf32>
    %c0_51 = arith.constant 0 : index
    %c0_52 = arith.constant 0 : index
    %93 = vector.load %arg17[%c0_51, %c0_52] : memref<4x32xf32, #tpu.memory_space<vmem>>, vector<4x32xf32>
    tpu.vector_store %arg17[%c0_51, %c0_52], %92 {strides = array<i32>} : memref<4x32xf32, #tpu.memory_space<vmem>>, vector<4x32xf32>,
    %c0_53 = arith.constant 0 : index
    %c0_54 = arith.constant 0 : index
    %94 = vector.load %arg18[%c0_53, %c0_54] : memref<4x32xf32, #tpu.memory_space<vmem>>, vector<4x32xf32>
    tpu.vector_store %arg18[%c0_53, %c0_54], %87 {strides = array<i32>} : memref<4x32xf32, #tpu.memory_space<vmem>>, vector<4x32xf32>,
    %c0_55 = arith.constant 0 : index
    %c0_56 = arith.constant 0 : index
    %95 = vector.load %arg19[%c0_55, %c0_56] : memref<4x32xf32, #tpu.memory_space<vmem>>, vector<4x32xf32>
    tpu.vector_store %arg19[%c0_55, %c0_56], %85 {strides = array<i32>} : memref<4x32xf32, #tpu.memory_space<vmem>>, vector<4x32xf32>,
    return
  }
}

</mosaic_0001>

<llo_original>
// kernel: tile.9
$region0: #{tile.9}
  %s0 = inlined_call_operand.vmem [shape: f32[4,8,4], index: 0, kind: input, shape index: {}]
  %s1 = inlined_call_operand.vmem [shape: f32[4,32], index: 1, kind: output, shape index: {}]
  $region1: #{tile.9} parent=0
    #allocation0 [shape = 'u8[4096]{0}', space=vmem, size = 0x1000, scoped, tag = 'scoped mem for output reshape']
    %v2 = vld [vmem:[%s0] ss:$8 sm:$0xf]
    %vm3 = vcmask 31744
    %4 = vst.msk [vmem:[#allocation0] sm:$0xf] %vm3, %v2
    %s5 = scalar_lea.vmem %s0, 7
    %v6 = vld [vmem:[%s5] ss:$8 sm:$0xf]
    %7 = vrot.lane.b32.xlu0 %v6, 28
    %v8 = vpop.permute.xlu0 %7
    %vm9 = vcmask 261344
    %10 = vst.msk [vmem:[#allocation0] sm:$0xf] %vm9, %v8
    %s11 = scalar_lea.vmem %s0, 6
    %v12 = vld [vmem:[%s11] ss:$8 sm:$0xf]
    %13 = vrot.lane.b32.xlu0 %v12, 24
    %v14 = vpop.permute.xlu0 %13
    %vm15 = vcmask 228544
    %16 = vst.msk [vmem:[#allocation0] sm:$0xf] %vm15, %v14
    %s17 = scalar_lea.vmem %s0, 5
    %v18 = vld [vmem:[%s17] ss:$8 sm:$0xf]
    %19 = vrot.lane.b32.xlu0 %v18, 20
    %v20 = vpop.permute.xlu0 %19
    %vm21 = vcmask 195744
    %22 = vst.msk [vmem:[#allocation0] sm:$0xf] %vm21, %v20
    %s23 = scalar_lea.vmem %s0, 4
    %v24 = vld [vmem:[%s23] ss:$8 sm:$0xf]
    %25 = vrot.lane.b32.xlu0 %v24, 16
    %v26 = vpop.permute.xlu0 %25
    %vm27 = vcmask 162944
    %28 = vst.msk [vmem:[#allocation0] sm:$0xf] %vm27, %v26
    %s29 = scalar_lea.vmem %s0, 3
    %v30 = vld [vmem:[%s29] ss:$8 sm:$0xf]
    %31 = vrot.lane.b32.xlu0 %v30, 12
    %v32 = vpop.permute.xlu0 %31
    %vm33 = vcmask 130144
    %34 = vst.msk [vmem:[#allocation0] sm:$0xf] %vm33, %v32
    %s35 = scalar_lea.vmem %s0, 2
    %v36 = vld [vmem:[%s35] ss:$8 sm:$0xf]
    %37 = vrot.lane.b32.xlu0 %v36, 8
    %v38 = vpop.permute.xlu0 %37
    %vm39 = vcmask 97344
    %40 = vst.msk [vmem:[#allocation0] sm:$0xf] %vm39, %v38
    %s41 = scalar_lea.vmem %s0, 1
    %v42 = vld [vmem:[%s41] ss:$8 sm:$0xf]
    %43 = vrot.lane.b32.xlu0 %v42, 4
    %v44 = vpop.permute.xlu0 %43
    %vm45 = vcmask 64544
    %46 = vst.msk [vmem:[#allocation0] sm:$0xf] %vm45, %v44
    %s48 = ssub.s32 16, 1
    %v49 = vld [vmem:[#allocation0] sm:%s48]
    %s51 = ssub.s32 16, 1
    %52 = vst [vmem:[%s1] sm:%s51] %v49

// kernel: decoder_forward.1
$region0: #{decoder_forward.1}
  #allocation0 [shape = 'u32[]', space=smem, size = 0x4, offset = 0x4, fixed_abs, tag = 'smem constant byte address 0x4 - core index']
  #allocation1 [shape = 'u32[72,128]{1,0:T(1,128)}', space=vmem, size = 0x9000, scoped, tag = 'internal scratch']
  %s0 = inlined_call_operand.vmem [shape: s32[4,1], index: 0, kind: input, shape index: {}]
  %s1 = inlined_call_operand.vmem [shape: f32[32,8], index: 1, kind: input, shape index: {}]
  %s2 = inlined_call_operand.vmem [shape: f32[32,16], index: 2, kind: input, shape index: {}]
  %s3 = inlined_call_operand.vmem [shape: f32[2,4,16], index: 3, kind: input, shape index: {}]
  %s4 = inlined_call_operand.vmem [shape: f32[2,4,16], index: 4, kind: input, shape index: {}]
  %s5 = inlined_call_operand.vmem [shape: f32[32,64], index: 5, kind: input, shape index: {}]
  %s6 = inlined_call_operand.vmem [shape: f32[1,64], index: 6, kind: input, shape index: {}]
  %s7 = inlined_call_operand.vmem [shape: f32[64,40], index: 7, kind: input, shape index: {}]
  %s8 = inlined_call_operand.vmem [shape: f32[16,40], index: 8, kind: input, shape index: {}]
  %s9 = inlined_call_operand.vmem [shape: f32[1,40], index: 9, kind: input, shape index: {}]
  %s10 = inlined_call_operand.vmem [shape: f32[40,2], index: 10, kind: input, shape index: {}]
  %s11 = inlined_call_operand.vmem [shape: f32[1,2], index: 11, kind: input, shape index: {}]
  %s12 = inlined_call_operand.vmem [shape: f32[4,32], index: 12, kind: input, shape index: {}]
  %s13 = inlined_call_operand.vmem [shape: f32[72,128], index: 13, kind: input, shape index: {}]
  %s14 = inlined_call_operand.vmem [shape: f32[1,128], index: 14, kind: input, shape index: {}]
  %s15 = inlined_call_operand.vmem [shape: f32[32,32], index: 15, kind: input, shape index: {}]
  %s16 = inlined_call_operand.vmem [shape: f32[1,32], index: 16, kind: input, shape index: {}]
  %s17 = inlined_call_operand.hbm [shape: f32[4,32], index: 17, kind: output, shape index: {0}]
  %s18 = inlined_call_operand.hbm [shape: f32[4,32], index: 18, kind: output, shape index: {1}]
  %s19 = inlined_call_operand.hbm [shape: f32[4,32], index: 19, kind: output, shape index: {2}]
  %20 = xla_tuple %s17, %s18, %s19
  %s21 = sld [smem:[#allocation0]]
  $region94: #{decoder_forward.1} parent=0
    _
  %s23 = ssub.s32 1, %s21
  %s24 = scalar_select 0, %s23, %s21
  $region1: #{decoder_forward.1} parent=0
    #allocation2 [shape = 'u8[2048]{0}', space=vmem, size = 0x800, scoped, tag = 'output window, operand 0, single buffered']
    #allocation3 [shape = 's32[1]{0}', space=sflag, size = 0x4, scoped, tag = 'scoped memory for decoder_forward.1']
    #allocation4 [shape = 'u8[2048]{0}', space=vmem, size = 0x800, scoped, tag = 'output window, operand 1, single buffered']
    #allocation5 [shape = 's32[1]{0}', space=sflag, size = 0x4, scoped, tag = 'scoped memory for decoder_forward.1']
    #allocation6 [shape = 'u8[2048]{0}', space=vmem, size = 0x800, scoped, tag = 'output window, operand 2, single buffered']
    %25 = vsyncpa [#allocation3], 0
    %26 = vsyncpa [#allocation5], 0
    // Predicated region
    $region2: #{decoder_forward.1} parent=1 // pred_check
      _
    $region3: #{decoder_forward.1} parent=1 // pred_check_branch
      %28 = sbr.rel (0) target = $region5
    $region4: #{decoder_forward.1} parent=1 // pred_region
      _
    $region5: #{decoder_forward.1} parent=1 // pred_fallthru
      _
    // Predicated region
    $region6: #{decoder_forward.1} parent=1 // pred_check
      _
    $region7: #{decoder_forward.1} parent=1 // pred_check_branch
      %30 = sbr.rel (0) target = $region9
    $region8: #{decoder_forward.1} parent=1 // pred_region
      _
    $region9: #{decoder_forward.1} parent=1 // pred_fallthru
      _
    // Predicated region
    $region10: #{decoder_forward.1} parent=1 // pred_check
      _
    $region11: #{decoder_forward.1} parent=1 // pred_check_branch
      %32 = sbr.rel (0) target = $region13
    $region12: #{decoder_forward.1} parent=1 // pred_region
      _
    $region13: #{decoder_forward.1} parent=1 // pred_fallthru
      _
    // Predicated region
    $region14: #{decoder_forward.1} parent=1 // pred_check
      _
    $region15: #{decoder_forward.1} parent=1 // pred_check_branch
      %34 = sbr.rel (0) target = $region17
    $region16: #{decoder_forward.1} parent=1 // pred_region
      _
    $region17: #{decoder_forward.1} parent=1 // pred_fallthru
      _
    // Predicated region
    $region18: #{decoder_forward.1} parent=1 // pred_check
      _
    $region19: #{decoder_forward.1} parent=1 // pred_check_branch
      %36 = sbr.rel (0) target = $region21
    $region20: #{decoder_forward.1} parent=1 // pred_region
      _
    $region21: #{decoder_forward.1} parent=1 // pred_fallthru
      _
    // Predicated region
    $region22: #{decoder_forward.1} parent=1 // pred_check
      _
    $region23: #{decoder_forward.1} parent=1 // pred_check_branch
      %38 = sbr.rel (0) target = $region25
    $region24: #{decoder_forward.1} parent=1 // pred_region
      _
    $region25: #{decoder_forward.1} parent=1 // pred_fallthru
      _
    // Predicated region
    $region26: #{decoder_forward.1} parent=1 // pred_check
      _
    $region27: #{decoder_forward.1} parent=1 // pred_check_branch
      %40 = sbr.rel (0) target = $region29
    $region28: #{decoder_forward.1} parent=1 // pred_region
      _
    $region29: #{decoder_forward.1} parent=1 // pred_fallthru
      _
    // Predicated region
    $region30: #{decoder_forward.1} parent=1 // pred_check
      _
    $region31: #{decoder_forward.1} parent=1 // pred_check_branch
      %42 = sbr.rel (0) target = $region33
    $region32: #{decoder_forward.1} parent=1 // pred_region
      _
    $region33: #{decoder_forward.1} parent=1 // pred_fallthru
      _
    // Predicated region
    $region34: #{decoder_forward.1} parent=1 // pred_check
      _
    $region35: #{decoder_forward.1} parent=1 // pred_check_branch
      %44 = sbr.rel (0) target = $region37
    $region36: #{decoder_forward.1} parent=1 // pred_region
      _
    $region37: #{decoder_forward.1} parent=1 // pred_fallthru
      _
    // Predicated region
    $region38: #{decoder_forward.1} parent=1 // pred_check
      _
    $region39: #{decoder_forward.1} parent=1 // pred_check_branch
      %46 = sbr.rel (0) target = $region41
    $region40: #{decoder_forward.1} parent=1 // pred_region
      _
    $region41: #{decoder_forward.1} parent=1 // pred_fallthru
      _
    // Predicated region
    $region42: #{decoder_forward.1} parent=1 // pred_check
      _
    $region43: #{decoder_forward.1} parent=1 // pred_check_branch
      %48 = sbr.rel (0) target = $region45
    $region44: #{decoder_forward.1} parent=1 // pred_region
      _
    $region45: #{decoder_forward.1} parent=1 // pred_fallthru
      _
    // Predicated region
    $region46: #{decoder_forward.1} parent=1 // pred_check
      _
    $region47: #{decoder_forward.1} parent=1 // pred_check_branch
      %50 = sbr.rel (0) target = $region49
    $region48: #{decoder_forward.1} parent=1 // pred_region
      _
    $region49: #{decoder_forward.1} parent=1 // pred_fallthru
      _
    // Predicated region
    $region50: #{decoder_forward.1} parent=1 // pred_check
      _
    $region51: #{decoder_forward.1} parent=1 // pred_check_branch
      %52 = sbr.rel (0) target = $region53
    $region52: #{decoder_forward.1} parent=1 // pred_region
      _
    $region53: #{decoder_forward.1} parent=1 // pred_fallthru
      _
    // Predicated region
    $region54: #{decoder_forward.1} parent=1 // pred_check
      _
    $region55: #{decoder_forward.1} parent=1 // pred_check_branch
      %54 = sbr.rel (0) target = $region57
    $region56: #{decoder_forward.1} parent=1 // pred_region
      _
    $region57: #{decoder_forward.1} parent=1 // pred_fallthru
      _
    // Predicated region
    $region58: #{decoder_forward.1} parent=1 // pred_check
      _
    $region59: #{decoder_forward.1} parent=1 // pred_check_branch
      %56 = sbr.rel (0) target = $region61
    $region60: #{decoder_forward.1} parent=1 // pred_region
      _
    $region61: #{decoder_forward.1} parent=1 // pred_fallthru
      _
    // Predicated region
    $region62: #{decoder_forward.1} parent=1 // pred_check
      _
    $region63: #{decoder_forward.1} parent=1 // pred_check_branch
      %58 = sbr.rel (0) target = $region65
    $region64: #{decoder_forward.1} parent=1 // pred_region
      _
    $region65: #{decoder_forward.1} parent=1 // pred_fallthru
      _
    // Predicated region
    $region66: #{decoder_forward.1} parent=1 // pred_check
      _
    $region67: #{decoder_forward.1} parent=1 // pred_check_branch
      %60 = sbr.rel (0) target = $region69
    $region68: #{decoder_forward.1} parent=1 // pred_region
      _
    $region69: #{decoder_forward.1} parent=1 // pred_fallthru
      _
    %v61 = vld [vmem:[%s3] sm:$0xf]
    %v62 = vld [vmem:[%s3 + $0x4] sm:$0xf]
    %vm63 = vcmask 125952
    %v64 = vsel %vm63, %v61, 0.0
    %v65 = vsel %vm63, %v62, 0.0
    %v66 = vadd.f32 %v64, %v65
    %v67 = vrcp.pop 2.0
    %v68 = vmul.f32 2.0, %v67
    %v69 = vsub.f32 1.0, %v68
    %v70 = vmul.f32 %v67, %v69
    %v71 = vadd.f32 %v67, %v70
    %vm72 = vweird.f32 %v67
    %v73 = vsel %vm72, %v67, %v71
    %v74 = vmul.f32 %v66, %v73
    %v75 = vld [vmem:[%s4] sm:$0xf]
    %v76 = vld [vmem:[%s4 + $0x4] sm:$0xf]
    %v77 = vsel %vm63, %v75, 0.0
    %v78 = vsel %vm63, %v76, 0.0
    %v79 = vadd.f32 %v77, %v78
    %v80 = vmul.f32 %v79, %v73
    %82 = vrot.lane.b32.xlu0 %v74, 16
    %v83 = vpop.permute.xlu0 %82
    %vm85 = vcmask 130048
    %v86 = vsel %vm85, %v80, %v83
    %v87 = vld [vmem:[%s5] sm:$0xff]
    %v88 = vld [vmem:[%s5 + $0x8] sm:$0xff]
    %v89 = vld [vmem:[%s5 + $0x10] sm:$0xff]
    %v90 = vld [vmem:[%s5 + $0x18] sm:$0xff]
    %v91 = vld [vmem:[%s6] sm:$0x1]
    %v93 = vperm.slane %v91, 0
    %vm95 = vcmask 261120
    %v97 = vsel %vm95, %v86, 0
    %99 = vmatpush.msra.mxu0 0.0
    %100 = vmatpush.msra.mxu0 0.0
    %101 = vmatpush.msra.mxu0 0.0
    %102 = vmatpush.msra.mxu0 0.0
    %103 = vmatpush.msra.mxu0 0.0
    %104 = vmatpush.msra.mxu0 0.0
    %105 = vmatpush.msra.mxu0 0.0
    %106 = vmatpush.msra.mxu0 0.0
    %107 = vmatpush.msra.mxu0 0.0
    %108 = vmatpush.msra.mxu0 0.0
    %109 = vmatpush.msra.mxu0 0.0
    %110 = vmatpush.msra.mxu0 0.0
    %111 = vmatpush.msra.mxu0 %v90
    %112 = vmatpush.msra.mxu0 %v89
    %113 = vmatpush.msra.mxu0 %v88
    %114 = vmatpush.msra.mxu0 %v87
    %115 = vmatmul.f32.gmra.mxu0 %v97
    %v116 = vpop.f32.mrf.mxu0
    %v117 = vadd.f32 %v93, %v116
    %118 = vdwg.mxu0
    %v119 = vlaneseq
    %v120 = vand.u32 %v119, 127
    %v121 = vld [vmem:[%s0] sm:$0xf]
    %122 = vset.pattern.permute.xlu0 0
    %123 = vperm.xlu0 %122, %v121
    %v124 = vpop.permute.xlu0 %123
    %vm125 = vcmp.eq.s32.totalorder %v120, %v124
    %v126 = vsel %vm125, 1, 0
    %v127 = vcvt.s32.f32 %v126
    %v128 = vld [vmem:[%s1] sm:$0xff]
    %v129 = vld [vmem:[%s1 + $0x8] sm:$0xff]
    %v130 = vld [vmem:[%s1 + $0x10] sm:$0xff]
    %v131 = vld [vmem:[%s1 + $0x18] sm:$0xff]
    %v133 = vsel %vm95, %v127, 0
    %135 = vmatpush.msra.mxu0 0.0
    %136 = vmatpush.msra.mxu0 0.0
    %137 = vmatpush.msra.mxu0 0.0
    %138 = vmatpush.msra.mxu0 0.0
    %139 = vmatpush.msra.mxu0 0.0
    %140 = vmatpush.msra.mxu0 0.0
    %141 = vmatpush.msra.mxu0 0.0
    %142 = vmatpush.msra.mxu0 0.0
    %143 = vmatpush.msra.mxu0 0.0
    %144 = vmatpush.msra.mxu0 0.0
    %145 = vmatpush.msra.mxu0 0.0
    %146 = vmatpush.msra.mxu0 0.0
    %147 = vmatpush.msra.mxu0 %v131
    %148 = vmatpush.msra.mxu0 %v130
    %149 = vmatpush.msra.mxu0 %v129
    %150 = vmatpush.msra.mxu0 %v128
    %151 = vmatmul.f32.gmra.mxu0 %v133
    %v152 = vpop.f32.mrf.mxu0
    %v153 = vadd.f32 0.0, %v152
    %154 = vdwg.mxu0
    %v155 = vld [vmem:[%s2] sm:$0xff]
    %v156 = vld [vmem:[%s2 + $0x8] sm:$0xff]
    %v157 = vld [vmem:[%s2 + $0x10] sm:$0xff]
    %v158 = vld [vmem:[%s2 + $0x18] sm:$0xff]
    %v159 = vld [vmem:[%s7] sm:$0xff]
    %v160 = vld [vmem:[%s7 + $0x8] sm:$0xff]
    %v161 = vld [vmem:[%s7 + $0x10] sm:$0xff]
    %v162 = vld [vmem:[%s7 + $0x18] sm:$0xff]
    %v163 = vld [vmem:[%s7 + $0x20] sm:$0xff]
    %v164 = vld [vmem:[%s7 + $0x28] sm:$0xff]
    %v165 = vld [vmem:[%s7 + $0x30] sm:$0xff]
    %v166 = vld [vmem:[%s7 + $0x38] sm:$0xff]
    %v167 = vld [vmem:[%s9] sm:$0x1]
    %v169 = vperm.slane %v167, 0
    %vm171 = vcmask 523264
    %v173 = vsel %vm171, %v117, 0
    %175 = vmatpush.msra.mxu0 0.0
    %176 = vmatpush.msra.mxu0 0.0
    %177 = vmatpush.msra.mxu0 0.0
    %178 = vmatpush.msra.mxu0 0.0
    %179 = vmatpush.msra.mxu0 0.0
    %180 = vmatpush.msra.mxu0 0.0
    %181 = vmatpush.msra.mxu0 0.0
    %182 = vmatpush.msra.mxu0 0.0
    %183 = vmatpush.msra.mxu0 %v166
    %184 = vmatpush.msra.mxu0 %v165
    %185 = vmatpush.msra.mxu0 %v164
    %186 = vmatpush.msra.mxu0 %v163
    %187 = vmatpush.msra.mxu0 %v162
    %188 = vmatpush.msra.mxu0 %v161
    %189 = vmatpush.msra.mxu0 %v160
    %190 = vmatpush.msra.mxu0 %v159
    %191 = vmatmul.f32.gmra.mxu0 %v173
    %v192 = vpop.f32.mrf.mxu0
    %v193 = vadd.f32 %v169, %v192
    %194 = vdwg.mxu0
    %v195 = vld [vmem:[%s8] sm:$0xff]
    %v196 = vld [vmem:[%s8 + $0x8] sm:$0xff]
    %v198 = vrot.slane %v193, 4
    %vm200 = vcmask 1043456
    %v201 = vsel %vm200, %v193, %v198
    %v203 = vsel %vm85, %v155, 0
    %v206 = vsel %vm85, %v156, 0
    %v209 = vsel %vm85, %v157, 0
    %v212 = vsel %vm85, %v158, 0
    %214 = vmatpush.msra.mxu0 0.0
    %215 = vmatpush.msra.mxu0 0.0
    %216 = vmatpush.msra.mxu0 0.0
    %217 = vmatpush.msra.mxu0 0.0
    %218 = vmatpush.msra.mxu0 0.0
    %219 = vmatpush.msra.mxu0 0.0
    %220 = vmatpush.msra.mxu0 0.0
    %221 = vmatpush.msra.mxu0 0.0
    %222 = vmatpush.msra.mxu0 0.0
    %223 = vmatpush.msra.mxu0 0.0
    %224 = vmatpush.msra.mxu0 0.0
    %225 = vmatpush.msra.mxu0 0.0
    %226 = vmatpush.msra.mxu0 0.0
    %227 = vmatpush.msra.mxu0 0.0
    %228 = vmatpush.msra.mxu0 %v196
    %229 = vmatpush.msra.mxu0 %v195
    %230 = vmatmul.f32.gmra.mxu0 %v203
    %v231 = vpop.f32.mrf.mxu0
    %v232 = vadd.f32 %v201, %v231
    %233 = vmatmul.f32.gmra.mxu0 %v206
    %v234 = vpop.f32.mrf.mxu0
    %v235 = vadd.f32 %v201, %v234
    %236 = vmatmul.f32.gmra.mxu0 %v209
    %v237 = vpop.f32.mrf.mxu0
    %v238 = vadd.f32 %v201, %v237
    %239 = vmatmul.f32.gmra.mxu0 %v212
    %v240 = vpop.f32.mrf.mxu0
    %v241 = vadd.f32 %v201, %v240
    %242 = vdwg.mxu0
    %v243 = vtanh.pop %v232
    %v244 = vtanh.pop %v235
    %v245 = vtanh.pop %v238
    %v246 = vtanh.pop %v241
    %v247 = vld [vmem:[%s10] sm:$0xff]
    %v248 = vld [vmem:[%s10 + $0x8] sm:$0xff]
    %v249 = vld [vmem:[%s10 + $0x10] sm:$0xff]
    %v250 = vld [vmem:[%s10 + $0x18] sm:$0xff]
    %v251 = vld [vmem:[%s10 + $0x20] sm:$0xff]
    %v252 = vld [vmem:[%s11] sm:$0x1]
    %v254 = vperm.slane %v252, 0
    %vm256 = vcmask 326656
    %v258 = vsel %vm256, %v243, 0
    %v261 = vsel %vm256, %v244, 0
    %v264 = vsel %vm256, %v245, 0
    %v267 = vsel %vm256, %v246, 0
    %269 = vmatpush.msra.mxu0 0.0
    %270 = vmatpush.msra.mxu0 0.0
    %271 = vmatpush.msra.mxu0 0.0
    %272 = vmatpush.msra.mxu0 0.0
    %273 = vmatpush.msra.mxu0 0.0
    %274 = vmatpush.msra.mxu0 0.0
    %275 = vmatpush.msra.mxu0 0.0
    %276 = vmatpush.msra.mxu0 0.0
    %277 = vmatpush.msra.mxu0 0.0
    %278 = vmatpush.msra.mxu0 0.0
    %279 = vmatpush.msra.mxu0 0.0
    %280 = vmatpush.msra.mxu0 %v251
    %281 = vmatpush.msra.mxu0 %v250
    %282 = vmatpush.msra.mxu0 %v249
    %283 = vmatpush.msra.mxu0 %v248
    %284 = vmatpush.msra.mxu0 %v247
    %285 = vmatmul.f32.gmra.mxu0 %v258
    %v286 = vpop.f32.mrf.mxu0
    %v287 = vadd.f32 %v254, %v286
    %288 = vmatmul.f32.gmra.mxu0 %v261
    %v289 = vpop.f32.mrf.mxu0
    %v290 = vadd.f32 %v254, %v289
    %291 = vmatmul.f32.gmra.mxu0 %v264
    %v292 = vpop.f32.mrf.mxu0
    %v293 = vadd.f32 %v254, %v292
    %294 = vmatmul.f32.gmra.mxu0 %v267
    %v295 = vpop.f32.mrf.mxu0
    %v296 = vadd.f32 %v254, %v295
    %297 = vdwg.mxu0
    %vm298 = vcmask 15360
    %v299 = vsel %vm298, %v287, -inf
    %v300 = vsel %vm298, %v290, -inf
    %v301 = vsel %vm298, %v293, -inf
    %v302 = vsel %vm298, %v296, -inf
    %v303 = vmax.f32 %v299, %v300
    %v304 = vmax.f32 %v301, %v302
    %v305 = vmax.f32 %v303, %v304
    %v306 = vrot.slane %v305, 4
    %v307 = vmax.f32 %v305, %v306
    %v308 = vrot.slane %v307, 2
    %v309 = vmax.f32 %v307, %v308
    %v310 = vrot.slane %v309, 1
    %v311 = vmax.f32 %v309, %v310
    %v312 = vsub.f32 %v287, %v311
    %v313 = vsub.f32 %v290, %v311
    %v314 = vsub.f32 %v293, %v311
    %v315 = vsub.f32 %v296, %v311
    %v316 = vmul.f32 %v312, 1.442695
    %v317 = vpow.pop %v316
    %v318 = vmul.f32 %v313, 1.442695
    %v319 = vpow.pop %v318
    %v320 = vmul.f32 %v314, 1.442695
    %v321 = vpow.pop %v320
    %v322 = vmul.f32 %v315, 1.442695
    %v323 = vpow.pop %v322
    %v324 = vld [vmem:[%s12] sm:$0xf]
    %v326 = vsel %vm95, %v324, 0
    %328 = vmatpush.msra.mxu0 0.0
    %329 = vmatpush.msra.mxu0 0.0
    %330 = vmatpush.msra.mxu0 0.0
    %331 = vmatpush.msra.mxu0 0.0
    %332 = vmatpush.msra.mxu0 0.0
    %333 = vmatpush.msra.mxu0 0.0
    %334 = vmatpush.msra.mxu0 0.0
    %335 = vmatpush.msra.mxu0 0.0
    %336 = vmatpush.msra.mxu0 0.0
    %337 = vmatpush.msra.mxu0 0.0
    %338 = vmatpush.msra.mxu0 0.0
    %339 = vmatpush.msra.mxu0 0.0
    %340 = vmatpush.msra.mxu0 %v323
    %341 = vmatpush.msra.mxu0 %v321
    %342 = vmatpush.msra.mxu0 %v319
    %343 = vmatpush.msra.mxu0 %v317
    %344 = vmatmul.f32.gmra.mxu0 %v326
    %v345 = vpop.f32.mrf.mxu0
    %v346 = vadd.f32 0.0, %v345
    %347 = vdwg.mxu0
    %v349 = vrot.slane %v346, 4
    %v351 = vsel %vm200, %v346, %v349
    %v352 = vrcp.pop %v351
    %v353 = vmul.f32 %v351, %v352
    %v354 = vsub.f32 1.0, %v353
    %v355 = vmul.f32 %v352, %v354
    %v356 = vadd.f32 %v352, %v355
    %vm357 = vweird.f32 %v351
    %vm358 = vweird.f32 %v352
    %vm359 = vmor %vm357, %vm358
    %v360 = vsel %vm359, %v352, %v356
    %v361 = vand.u32 2147483647, %v351
    %vm362 = vcmp.eq.f32.partialorder %v361, 8.507059e+37
    %v363 = vand.u32 %v351, 2147483648
    %v364 = vor.u32 1.1754944e-38, %v363
    %v365 = vsel %vm362, %v364, %v360
    %v366 = vmul.f32 %v317, %v365
    %v367 = vmul.f32 %v319, %v365
    %v368 = vmul.f32 %v321, %v365
    %v369 = vmul.f32 %v323, %v365
    %371 = vset.pattern.permute.xlu0 0
    %372 = vperm.xlu0 %371, %v366
    %v373 = vpop.permute.xlu0 %372
    %376 = vset.pattern.permute.xlu0 0
    %377 = vperm.xlu0 %376, %v367
    %v378 = vpop.permute.xlu0 %377
    %381 = vset.pattern.permute.xlu0 0
    %382 = vperm.xlu0 %381, %v368
    %v383 = vpop.permute.xlu0 %382
    %386 = vset.pattern.permute.xlu0 0
    %387 = vperm.xlu0 %386, %v369
    %v388 = vpop.permute.xlu0 %387
    %v390 = vmul.f32 %v155, %v373
    %v391 = vmul.f32 %v156, %v378
    %v392 = vmul.f32 %v157, %v383
    %v393 = vmul.f32 %v158, %v388
    %394 = vset.pattern.permute.xlu0 1
    %395 = vperm.xlu0 %394, %v366
    %v396 = vpop.permute.xlu0 %395
    %398 = vset.pattern.permute.xlu0 1
    %399 = vperm.xlu0 %398, %v367
    %v400 = vpop.permute.xlu0 %399
    %402 = vset.pattern.permute.xlu0 1
    %403 = vperm.xlu0 %402, %v368
    %v404 = vpop.permute.xlu0 %403
    %406 = vset.pattern.permute.xlu0 1
    %407 = vperm.xlu0 %406, %v369
    %v408 = vpop.permute.xlu0 %407
    %v410 = vmul.f32 %v155, %v396
    %v411 = vmul.f32 %v156, %v400
    %v412 = vmul.f32 %v157, %v404
    %v413 = vmul.f32 %v158, %v408
    %418 = vrot.lane.b32.xlu0 %v410, 16
    %v419 = vpop.permute.xlu0 %418
    %420 = vrot.lane.b32.xlu0 %v411, 16
    %v421 = vpop.permute.xlu0 %420
    %422 = vrot.lane.b32.xlu0 %v412, 16
    %v423 = vpop.permute.xlu0 %422
    %424 = vrot.lane.b32.xlu0 %v413, 16
    %v425 = vpop.permute.xlu0 %424
    %v430 = vsel %vm85, %v390, %v419
    %v431 = vsel %vm85, %v391, %v421
    %v432 = vsel %vm85, %v392, %v423
    %v433 = vsel %vm85, %v393, %v425
    %434 = vmatpush.msra.mxu0 0.0
    %435 = vmatpush.msra.mxu0 0.0
    %436 = vmatpush.msra.mxu0 0.0
    %437 = vmatpush.msra.mxu0 0.0
    %438 = vmatpush.msra.mxu0 0.0
    %439 = vmatpush.msra.mxu0 0.0
    %440 = vmatpush.msra.mxu0 0.0
    %441 = vmatpush.msra.mxu0 0.0
    %442 = vmatpush.msra.mxu0 0.0
    %443 = vmatpush.msra.mxu0 0.0
    %444 = vmatpush.msra.mxu0 0.0
    %445 = vmatpush.msra.mxu0 0.0
    %446 = vmatpush.msra.mxu0 %v433
    %447 = vmatpush.msra.mxu0 %v432
    %448 = vmatpush.msra.mxu0 %v431
    %449 = vmatpush.msra.mxu0 %v430
    %450 = vmatmul.f32.gmra.mxu0 %v326
    %v451 = vpop.f32.mrf.mxu0
    %v452 = vadd.f32 0.0, %v451
    %453 = vdwg.mxu0
    %455 = vrot.lane.b32.xlu0 %v452, 8
    %v456 = vpop.permute.xlu0 %455
    %458 = vrot.lane.b32.xlu0 %v117, 8
    %v459 = vpop.permute.xlu0 %458
    %vm461 = vcmask 64512
    %v462 = vsel %vm461, %v153, %v456
    %v463 = vsel %vm256, %v462, %v459
    %v464 = vld [vmem:[%s13] sm:$0xff]
    %v465 = vld [vmem:[%s13 + $0x8] sm:$0xff]
    %v466 = vld [vmem:[%s13 + $0x10] sm:$0xff]
    %v467 = vld [vmem:[%s13 + $0x18] sm:$0xff]
    %v468 = vld [vmem:[%s13 + $0x20] sm:$0xff]
    %v469 = vld [vmem:[%s13 + $0x28] sm:$0xff]
    %v470 = vld [vmem:[%s13 + $0x30] sm:$0xff]
    %v471 = vld [vmem:[%s13 + $0x38] sm:$0xff]
    %v472 = vld [vmem:[%s13 + $0x40] sm:$0xff]
    %v473 = vld [vmem:[%s14] sm:$0x1]
    %v475 = vperm.slane %v473, 0
    %vm477 = vcmask 588800
    %v479 = vsel %vm477, %v463, 0
    %481 = vmatpush.msra.mxu0 0.0
    %482 = vmatpush.msra.mxu0 0.0
    %483 = vmatpush.msra.mxu0 0.0
    %484 = vmatpush.msra.mxu0 0.0
    %485 = vmatpush.msra.mxu0 0.0
    %486 = vmatpush.msra.mxu0 0.0
    %487 = vmatpush.msra.mxu0 0.0
    %488 = vmatpush.msra.mxu0 %v472
    %489 = vmatpush.msra.mxu0 %v471
    %490 = vmatpush.msra.mxu0 %v470
    %491 = vmatpush.msra.mxu0 %v469
    %492 = vmatpush.msra.mxu0 %v468
    %493 = vmatpush.msra.mxu0 %v467
    %494 = vmatpush.msra.mxu0 %v466
    %495 = vmatpush.msra.mxu0 %v465
    %496 = vmatpush.msra.mxu0 %v464
    %497 = vmatmul.f32.gmra.mxu0 %v479
    %v498 = vpop.f32.mrf.mxu0
    %v499 = vadd.f32 %v475, %v498
    %500 = vdwg.mxu0
    %v501 = vxor.u32 %v499, 2147483648
    %v502 = vmul.f32 %v501, 1.442695
    %v503 = vpow.pop %v502
    %v504 = vadd.f32 %v503, 1.0
    %v505 = vrcp.pop %v504
    %v506 = vmul.f32 %v504, %v505
    %v507 = vsub.f32 1.0, %v506
    %v508 = vmul.f32 %v505, %v507
    %v509 = vadd.f32 %v505, %v508
    %vm510 = vweird.f32 %v504
    %vm511 = vweird.f32 %v505
    %vm512 = vmor %vm510, %vm511
    %v513 = vsel %vm512, %v505, %v509
    %v514 = vand.u32 2147483647, %v504
    %vm515 = vcmp.eq.f32.partialorder %v514, 8.507059e+37
    %v516 = vand.u32 %v504, 2147483648
    %v517 = vor.u32 1.1754944e-38, %v516
    %v518 = vsel %vm515, %v517, %v513
    %v519 = vmul.f32 1.0, %v518
    %v520 = vtanh.pop %v499
    %521 = vrot.lane.b32.xlu0 %v117, 32
    %v522 = vpop.permute.xlu0 %521
    %v524 = vmul.f32 %v519, %v522
    %526 = vrot.lane.b32.xlu0 %v520, 64
    %v527 = vpop.permute.xlu0 %526
    %v529 = vmul.f32 %v519, %v527
    %531 = vrot.lane.b32.xlu0 %v529, 32
    %v532 = vpop.permute.xlu0 %531
    %v534 = vadd.f32 %v524, %v532
    %v535 = vtanh.pop %v534
    %537 = vrot.lane.b32.xlu0 %v535, 64
    %v538 = vpop.permute.xlu0 %537
    %v540 = vmul.f32 %v519, %v538
    %v541 = vld [vmem:[%s15] sm:$0xff]
    %v542 = vld [vmem:[%s15 + $0x8] sm:$0xff]
    %v543 = vld [vmem:[%s15 + $0x10] sm:$0xff]
    %v544 = vld [vmem:[%s15 + $0x18] sm:$0xff]
    %v545 = vld [vmem:[%s16] sm:$0x1]
    %v547 = vperm.slane %v545, 0
    %550 = vrot.lane.b32.xlu0 %v540, 32
    %v551 = vpop.permute.xlu0 %550
    %v552 = vsel %vm95, %v551, 0
    %554 = vmatpush.msra.mxu0 0.0
    %555 = vmatpush.msra.mxu0 0.0
    %556 = vmatpush.msra.mxu0 0.0
    %557 = vmatpush.msra.mxu0 0.0
    %558 = vmatpush.msra.mxu0 0.0
    %559 = vmatpush.msra.mxu0 0.0
    %560 = vmatpush.msra.mxu0 0.0
    %561 = vmatpush.msra.mxu0 0.0
    %562 = vmatpush.msra.mxu0 0.0
    %563 = vmatpush.msra.mxu0 0.0
    %564 = vmatpush.msra.mxu0 0.0
    %565 = vmatpush.msra.mxu0 0.0
    %566 = vmatpush.msra.mxu0 %v544
    %567 = vmatpush.msra.mxu0 %v543
    %568 = vmatpush.msra.mxu0 %v542
    %569 = vmatpush.msra.mxu0 %v541
    %570 = vmatmul.f32.gmra.mxu0 %v552
    %v571 = vpop.f32.mrf.mxu0
    %v572 = vadd.f32 %v547, %v571
    %573 = vdwg.mxu0
    %vm574 = vcmask 257024
    %575 = vst.msk [vmem:[#allocation2] sm:$0xf] %vm574, %v572
    %577 = vst.msk [vmem:[#allocation4] sm:$0xf] %vm574, %v551
    %579 = vrot.lane.b32.xlu0 %v534, 96
    %v580 = vpop.permute.xlu0 %579
    %582 = vst.msk [vmem:[#allocation6] sm:$0xf] %vm574, %v580
    // Predicated region
    $region70: #{decoder_forward.1} parent=1 // pred_check
      _
    $region71: #{decoder_forward.1} parent=1 // pred_check_branch
      %584 = sbr.rel (0) target = $region73
    $region72: #{decoder_forward.1} parent=1 // pred_region
      %586 = vsyncadd [#allocation3], 0
      %s588 = sshll.u32 [#allocation2], 4
      %s589 = int_to_ptr.vmem [resolvable:$true] %s588
      %s590 = sshll.u32 %s17, 4
      %s591 = int_to_ptr.hbm [resolvable:$true] %s590
      %593 = dma.vmem_to_hbm [thread:$0]  %s589, 64, %s591, [#allocation3]
    $region73: #{decoder_forward.1} parent=1 // pred_fallthru
      _
    // Predicated region
    $region74: #{decoder_forward.1} parent=1 // pred_check
      _
    $region75: #{decoder_forward.1} parent=1 // pred_check_branch
      %595 = sbr.rel (0) target = $region77
    $region76: #{decoder_forward.1} parent=1 // pred_region
      %597 = vsyncadd [#allocation5], 0
      %s599 = sshll.u32 [#allocation4], 4
      %s600 = int_to_ptr.vmem [resolvable:$true] %s599
      %s601 = sshll.u32 %s18, 4
      %s602 = int_to_ptr.hbm [resolvable:$true] %s601
      %604 = dma.vmem_to_hbm [thread:$0]  %s600, 64, %s602, [#allocation5]
    $region77: #{decoder_forward.1} parent=1 // pred_fallthru
      _
    // Predicated region
    $region78: #{decoder_forward.1} parent=1 // pred_check
      _
    $region79: #{decoder_forward.1} parent=1 // pred_check_branch
      %606 = sbr.rel (0) target = $region81
    $region80: #{decoder_forward.1} parent=1 // pred_region
      %608 = vsyncadd [#allocation5], 0
      %s610 = sshll.u32 [#allocation6], 4
      %s611 = int_to_ptr.vmem [resolvable:$true] %s610
      %s612 = sshll.u32 %s19, 4
      %s613 = int_to_ptr.hbm [resolvable:$true] %s612
      %615 = dma.vmem_to_hbm [thread:$0]  %s611, 64, %s613, [#allocation5]
    $region81: #{decoder_forward.1} parent=1 // pred_fallthru
      _
    // Predicated region
    $region82: #{decoder_forward.1} parent=1 // pred_check
      _
    $region83: #{decoder_forward.1} parent=1 // pred_check_branch
      %617 = sbr.rel (0) target = $region85
    $region84: #{decoder_forward.1} parent=1 // pred_region
      %619 = dma.done [#allocation3], 64
    $region85: #{decoder_forward.1} parent=1 // pred_fallthru
      _
    // Predicated region
    $region86: #{decoder_forward.1} parent=1 // pred_check
      _
    $region87: #{decoder_forward.1} parent=1 // pred_check_branch
      %621 = sbr.rel (0) target = $region89
    $region88: #{decoder_forward.1} parent=1 // pred_region
      %623 = dma.done [#allocation5], 64
    $region89: #{decoder_forward.1} parent=1 // pred_fallthru
      _
    // Predicated region
    $region90: #{decoder_forward.1} parent=1 // pred_check
      _
    $region91: #{decoder_forward.1} parent=1 // pred_check_branch
      %625 = sbr.rel (0) target = $region93
    $region92: #{decoder_forward.1} parent=1 // pred_region
      %627 = dma.done [#allocation5], 64
    $region93: #{decoder_forward.1} parent=1 // pred_fallthru
      _
    %628 = vsyncpa [#allocation3], 1
    %629 = vsyncpa [#allocation5], 1

</llo_original>
